<compile_context>
chip_gen: v5e
topology: v5e:2x2
jax: 0.10.0
libtpu: 0.0.40
codegen_flags: <defaults>
</compile_context>

<pallas_src>
import functools

import jax
import jax.numpy as jnp
from jax import lax
from jax.experimental import pallas as pl
from jax.experimental.pallas import tpu as pltpu


def _round_up(x, m):
    return ((x + m - 1) // m) * m


def _choose_tile_s(s, c, pred_itemsize, requested):
    """Lane-dense spatial tile: multiple of 128, sized so the double-buffered
    pred block + target stream + scratch stay around <=12 MiB of VMEM, budgeted
    against *padded* sublanes (round_up(C, 32/itemsize)) so small/odd C and
    bf16 don't overshoot on v7x's 64 MiB-physical / 32 MiB-scoped VMEM."""
    s_pad = _round_up(s, 128)
    c_pad = _round_up(c, max(1, 32 // pred_itemsize))      # sublane-padded class count
    bytes_per_lane = (2 * c_pad * pred_itemsize            # pred, double-buffered
                      + 64                                 # target tile (sublane-padded), x2
                      + 32)                                # (8, ts)-padded f32 accumulator
    budget = 12 * 1024 * 1024
    cap = max(128, (budget // bytes_per_lane) // 128 * 128)
    ts = min(_round_up(max(requested, 128), 128), s_pad, cap)
    return max(128, ts)


def _focal_loss_kernel(*refs, gamma, has_alpha, ignore_index, s_total,
                       chunk_tiles, needs_mask):
    if has_alpha:
        pred_ref, tgt_ref, alpha_ref = refs[:3]
        rest = refs[3:]
    else:
        pred_ref, tgt_ref = refs[:2]
        alpha_ref = None
        rest = refs[2:]
    if ignore_index is None:
        sum_ref, acc_ref = rest
        cnt_ref = None
    else:
        sum_ref, cnt_ref, acc_ref = rest

    j = pl.program_id(2)                                  # spatial-tile (reduction) axis

    @pl.when(j == 0)
    def _():
        acc_ref[...] = jnp.zeros_like(acc_ref)

    logits = pred_ref[0].astype(jnp.float32)              # (C, TS), cast on-chip
    c, ts = logits.shape
    tgt = tgt_ref[0].astype(jnp.int32)                    # widen narrow target streams on-chip

    # Stable softmax pieces: exp is issued ONCE over the class axis and reused
    # for both the normalizer and pt (no second exp for pt).
    m = jnp.max(logits, axis=0, keepdims=True)            # (1, TS)
    e = jnp.exp(logits - m)                               # (C, TS), single EUP exp
    sumexp = jnp.sum(e, axis=0, keepdims=True)            # (1, TS)

    # One-hot gathers (TPU-friendly): logits[target] without materializing logp.
    class_ids = lax.broadcasted_iota(jnp.int32, (c, ts), 0)
    onehot = class_ids == tgt                             # (C, TS)
    g_logit = jnp.sum(jnp.where(onehot, logits, 0.0), axis=0, keepdims=True)
    logpt = (g_logit - m) - jnp.log(sumexp)               # (1, TS)

    if has_alpha:                                         # statically skipped when alpha is None
        at = jnp.sum(jnp.where(onehot, alpha_ref[...], 0.0), axis=0, keepdims=True)
        logpt = logpt * at

    g = float(gamma)
    if g == 0.0:
        loss = -logpt                                     # plain (alpha-weighted) CE: no pt/focal
    else:
        g_e = jnp.sum(jnp.where(onehot, e, 0.0), axis=0, keepdims=True)
        pt = g_e / sumexp                                 # exact divide; reuses exp(logits - m)
        base = jnp.maximum(1.0 - pt, 0.0)                 # clamp fp rounding (pt > 1)
        if g == int(g) and 1.0 <= g <= 16.0:
            # integer gamma: square-and-multiply on the VPU, no EUP pow
            exp_left = int(g)
            cur = base
            focal = None
            while exp_left:
                if exp_left & 1:
                    focal = cur if focal is None else focal * cur
                exp_left >>= 1
                if exp_left:
                    cur = cur * cur
        else:
            focal = base ** g
        loss = -(focal * logpt)

    keep = None if ignore_index is None else (tgt != ignore_index)

    def _accumulate(tail_valid):
        valid = tail_valid
        if keep is not None:
            valid = keep if valid is None else jnp.logical_and(valid, keep)
        if valid is None:
            acc_ref[0:1, :] += loss
        else:
            # select (not multiply): kills NaN/Inf from padded/ignored lanes
            acc_ref[0:1, :] += jnp.where(valid, loss, 0.0)
            if cnt_ref is not None:
                acc_ref[1:2, :] += valid.astype(jnp.float32)

    if needs_mask:
        p = pl.program_id(1)
        base_lane = (p * chunk_tiles + j) * ts            # first global lane of this tile
        is_edge = base_lane + ts > s_total

        @pl.when(jnp.logical_not(is_edge))
        def _():
            _accumulate(None)

        @pl.when(is_edge)
        def _():
            lane = lax.broadcasted_iota(jnp.int32, (1, ts), 1)
            _accumulate(base_lane + lane < s_total)
    else:
        _accumulate(None)

    @pl.when(j == pl.num_programs(2) - 1)
    def _():
        totals = jnp.sum(acc_ref[...], axis=-1, keepdims=True)  # one cross-lane reduce per row
        sum_ref[...] = totals[0:1, :].reshape(1, 1, 1)
        if cnt_ref is not None:
            cnt_ref[...] = totals[1:2, :].reshape(1, 1, 1)


def focal_loss_pallas(pred_nchw, target_nhw, *, gamma=0.0, alpha=None,
                      ignore_index=None, tile_s=4096):
    """Equivalent of FocalLoss(gamma, alpha, ignore_index)(pred, target) (mean)
    for 4-D NCHW pred. alpha follows the torch module: None, scalar (binary ->
    [alpha, 1-alpha]) or per-class list. pred streams in its own dtype (pass
    bf16 to halve HBM traffic); target streams in its own int dtype."""
    # TODO(synk): 3-D (N, T, C) pred path of the torch module is not implemented.
    n, c, h, w = pred_nchw.shape
    s = h * w
    pred3d = pred_nchw.reshape(n, c, s)                   # NCHW -> (N, C, S): pure view
    if not jnp.issubdtype(target_nhw.dtype, jnp.integer):
        target_nhw = target_nhw.astype(jnp.int32)
    tgt3d = target_nhw.reshape(n, 1, s)                   # keep narrow int dtype as-is

    has_alpha = alpha is not None
    inputs = [pred3d, tgt3d]
    if has_alpha:
        if isinstance(alpha, (float, int)):
            alpha_arr = jnp.asarray([float(alpha), 1.0 - float(alpha)], jnp.float32)
        else:
            alpha_arr = jnp.asarray(alpha, jnp.float32)
        inputs.append(alpha_arr.reshape(c, 1))

    ts = _choose_tile_s(s, c, jnp.dtype(pred_nchw.dtype).itemsize, tile_s)
    num_tiles = pl.cdiv(s, ts)

    # v7x has two TensorCores: when the batch axis can't feed both (N == 1),
    # split the spatial tiles into two independent parallel chunks, each with
    # its own partial-sum slot; on single-TC v5e/v6e this is just a loop.
    p_chunks = 1 if (n >= 2 or num_tiles < 2) else 2
    chunk_tiles = pl.cdiv(num_tiles, p_chunks)
    needs_mask = (p_chunks * chunk_tiles * ts) != s
    last_tile = num_tiles - 1

    def _space_map(i, p, j):
        # clamp so over-hanging tiles of the last chunk never DMA out of range
        return (i, 0, jnp.minimum(p * chunk_tiles + j, last_tile))

    in_specs = [pl.BlockSpec((1, c, ts), _space_map),     # pred   (N, C, S)
                pl.BlockSpec((1, 1, ts), _space_map)]     # target (N, 1, S)
    if has_alpha:
        in_specs.append(pl.BlockSpec((c, 1), lambda i, p, j: (0, 0)))  # fetched once

    out_map = lambda i, p, j: (i * p_chunks + p, 0, 0)
    part_shape = jax.ShapeDtypeStruct((n * p_chunks, 1, 1), jnp.float32)
    if ignore_index is None:
        out_shape = part_shape
        out_specs = pl.BlockSpec((1, 1, 1), out_map)
        acc_rows = 1
    else:
        out_shape = (part_shape, part_shape)
        out_specs = (pl.BlockSpec((1, 1, 1), out_map),
                     pl.BlockSpec((1, 1, 1), out_map))
        acc_rows = 2                                      # packed sum/count accumulator

    kernel = functools.partial(_focal_loss_kernel, gamma=float(gamma),
                               has_alpha=has_alpha, ignore_index=ignore_index,
                               s_total=s, chunk_tiles=chunk_tiles,
                               needs_mask=needs_mask)

    result = pl.pallas_call(
        kernel,
        out_shape=out_shape,
        grid_spec=pltpu.PrefetchScalarGridSpec(
            num_scalar_prefetch=0,
            grid=(n, p_chunks, chunk_tiles),
            in_specs=in_specs,
            out_specs=out_specs,
            scratch_shapes=[pltpu.VMEM((acc_rows, ts), jnp.float32)],
        ),
        compiler_params=pltpu.CompilerParams(
            dimension_semantics=("parallel", "parallel", "arbitrary"),
            vmem_limit_bytes=32 * 1024 * 1024),
    )(*inputs)

    if ignore_index is None:
        # Every one of the n*s pixels contributes: exact integer denominator.
        return jnp.sum(result) / (n * s)
    sums, cnts = result
    # NOTE: valid-pixel count accumulates in f32 (exact below ~2^24 per lane).
    return jnp.sum(sums) / jnp.sum(cnts)


def _focal_loss_ref(pred_nchw, target_nhw, gamma, alpha, ignore_index):
    n, c, h, w = pred_nchw.shape
    pred2d = jnp.transpose(pred_nchw.astype(jnp.float32), (0, 2, 3, 1)).reshape(-1, c)
    tgt = target_nhw.reshape(-1).astype(jnp.int32)
    keep = jnp.ones_like(tgt, dtype=bool) if ignore_index is None else tgt != ignore_index
    logp = jax.nn.log_softmax(pred2d, axis=-1)
    logpt = jnp.take_along_axis(logp, tgt[:, None], axis=1)[:, 0]
    pt = jnp.exp(logpt)
    if alpha is not None:
        if isinstance(alpha, (float, int)):
            alpha = [float(alpha), 1.0 - float(alpha)]
        at = jnp.asarray(alpha, jnp.float32)[tgt]
        logpt = logpt * at
    loss = -1.0 * jnp.maximum(1.0 - pt, 0.0) ** float(gamma) * logpt
    return jnp.sum(jnp.where(keep, loss, 0.0)) / jnp.sum(keep.astype(jnp.float32))


if __name__ == "__main__":
    key = jax.random.PRNGKey(0)
    k1, k2, k3, k4, k5, k6 = jax.random.split(key, 6)

    # Case 1: integer gamma + per-class alpha list, f32 pred, single spatial tile.
    N, C, H, W = 2, 4, 16, 16
    pred1 = jax.random.normal(k1, (N, C, H, W), dtype=jnp.float32)
    tgt1 = jax.random.randint(k2, (N, H, W), 0, C, dtype=jnp.int32)
    loss1 = jax.block_until_ready(
        focal_loss_pallas(pred1, tgt1, gamma=2.0, alpha=[0.1, 0.2, 0.3, 0.4]))
    ref1 = _focal_loss_ref(pred1, tgt1, 2.0, [0.1, 0.2, 0.3, 0.4], None)
    assert jnp.allclose(loss1, ref1, atol=1e-5, rtol=1e-5), (loss1, ref1)

    # Case 2: fractional gamma + ignore_index, multi-tile with tail masking,
    # int16 targets, N=1 so the spatial parallel-chunk axis (P=2) is exercised.
    N2, C2, H2, W2 = 1, 3, 20, 20
    pred2 = jax.random.normal(k3, (N2, C2, H2, W2), dtype=jnp.float32)
    tgt2 = jax.random.randint(k4, (N2, H2, W2), 0, C2, dtype=jnp.int32).astype(jnp.int16)
    loss2 = jax.block_until_ready(
        focal_loss_pallas(pred2, tgt2, gamma=1.5, alpha=None, ignore_index=0,
                          tile_s=128))
    ref2 = _focal_loss_ref(pred2, tgt2, 1.5, None, 0)
    assert jnp.allclose(loss2, ref2, atol=1e-5, rtol=1e-5), (loss2, ref2)

    # Case 3: gamma=0 fast path (weighted CE), scalar alpha (binary), bf16 pred stream.
    N3, C3, H3, W3 = 2, 2, 8, 8
    pred3 = jax.random.normal(k5, (N3, C3, H3, W3), dtype=jnp.float32).astype(jnp.bfloat16)
    tgt3 = jax.random.randint(k6, (N3, H3, W3), 0, C3, dtype=jnp.int32)
    loss3 = jax.block_until_ready(
        focal_loss_pallas(pred3, tgt3, gamma=0.0, alpha=0.25))
    ref3 = _focal_loss_ref(pred3, tgt3, 0.0, 0.25, None)
    assert jnp.allclose(loss3, ref3, atol=1e-5, rtol=1e-5), (loss3, ref3)

    print("KERNEL_OK")
</pallas_src>

<mosaic_0001>
module attributes {stable_mosaic.version = 11 : i64} {
  func.func @_focal_loss_kernel(%arg0: i32, %arg1: i32, %arg2: i32, %arg3: memref<1x4x256xf32, #tpu.memory_space<vmem>>, %arg4: memref<1x1x256xi32, #tpu.memory_space<vmem>>, %arg5: memref<4x1xf32, #tpu.memory_space<vmem>>, %arg6: memref<1x1x1xf32, #tpu.memory_space<vmem>>, %arg7: memref<1x256xf32, #tpu.memory_space<vmem>>) attributes {dimension_semantics = [#tpu.dimension_semantics<parallel>, #tpu.dimension_semantics<parallel>, #tpu.dimension_semantics<arbitrary>], iteration_bounds = array<i64: 2, 1, 1>, scalar_prefetch = 0 : i64, scratch_operands = 1 : i64, tpu.core_type = #tpu.core_type<tc>, window_params = [{transform_indices = @transform_0, window_bounds = array<i64: 1, 4, 256>}, {transform_indices = @transform_1, window_bounds = array<i64: 1, 1, 256>}, {pipeline_mode = #tpu.pipeline_mode<synchronous>, transform_indices = @transform_2, window_bounds = array<i64: 4, 1>}, {transform_indices = @transform_3, window_bounds = array<i64: 1, 1, 1>}]} {
    %c0_i32 = arith.constant 0 : i32
    %0 = arith.cmpi eq, %arg2, %c0_i32 : i32
    %1 = arith.extui %0 : i1 to i32
    %c0_i32_0 = arith.constant 0 : i32
    %2 = arith.cmpi ne, %1, %c0_i32_0 : i32
    scf.if %2 {
      %cst_24 = arith.constant 0.000000e+00 : f32
      %51 = vector.broadcast %cst_24 : f32 to vector<1x256xf32>
      %c0_25 = arith.constant 0 : index
      %c0_26 = arith.constant 0 : index
      %52 = vector.load %arg7[%c0_25, %c0_26] : memref<1x256xf32, #tpu.memory_space<vmem>>, vector<1x256xf32>
      tpu.vector_store %arg7[%c0_25, %c0_26], %51 {strides = array<i32>} : memref<1x256xf32, #tpu.memory_space<vmem>>, vector<1x256xf32>,
    } else {
    }
    %c0 = arith.constant 0 : index
    %c0_1 = arith.constant 0 : index
    %c0_2 = arith.constant 0 : index
    %3 = vector.load %arg3[%c0, %c0_1, %c0_2] : memref<1x4x256xf32, #tpu.memory_space<vmem>>, vector<1x4x256xf32>
    %4 = vector.shape_cast %3 : vector<1x4x256xf32> to vector<4x256xf32>
    %c0_3 = arith.constant 0 : index
    %c0_4 = arith.constant 0 : index
    %c0_5 = arith.constant 0 : index
    %5 = vector.load %arg4[%c0_3, %c0_4, %c0_5] : memref<1x1x256xi32, #tpu.memory_space<vmem>>, vector<1x1x256xi32>
    %6 = vector.shape_cast %5 : vector<1x1x256xi32> to vector<1x256xi32>
    %cst = arith.constant dense<0xFF800000> : vector<256xf32>
    %7 = vector.multi_reduction <maximumf>, %4, %cst [0] : vector<4x256xf32> to vector<256xf32>
    %8 = vector.shape_cast %7 : vector<256xf32> to vector<1x256xf32>
    %9 = vector.broadcast %8 : vector<1x256xf32> to vector<4x256xf32>
    %10 = arith.subf %4, %9 : vector<4x256xf32>
    %11 = math.exp %10 : vector<4x256xf32>
    %cst_6 = arith.constant dense<0.000000e+00> : vector<256xf32>
    %12 = vector.multi_reduction <add>, %11, %cst_6 [0] : vector<4x256xf32> to vector<256xf32>
    %13 = vector.shape_cast %12 : vector<256xf32> to vector<1x256xf32>
    %14 = tpu.iota {dimensions = array<i32: 0>} : vector<4x256xi32>
    %15 = vector.broadcast %6 : vector<1x256xi32> to vector<4x256xi32>
    %16 = arith.cmpi eq, %14, %15 : vector<4x256xi32>
    %cst_7 = arith.constant 0.000000e+00 : f32
    %17 = vector.broadcast %cst_7 : f32 to vector<4x256xf32>
    %18 = arith.select %16, %4, %17 : vector<4x256xi1>, vector<4x256xf32>
    %cst_8 = arith.constant dense<0.000000e+00> : vector<256xf32>
    %19 = vector.multi_reduction <add>, %18, %cst_8 [0] : vector<4x256xf32> to vector<256xf32>
    %20 = vector.shape_cast %19 : vector<256xf32> to vector<1x256xf32>
    %21 = arith.subf %20, %8 : vector<1x256xf32>
    %22 = math.log %13 : vector<1x256xf32>
    %23 = arith.subf %21, %22 : vector<1x256xf32>
    %c0_9 = arith.constant 0 : index
    %c0_10 = arith.constant 0 : index
    %24 = vector.load %arg5[%c0_9, %c0_10] : memref<4x1xf32, #tpu.memory_space<vmem>>, vector<4x1xf32>
    %cst_11 = arith.constant 0.000000e+00 : f32
    %25 = vector.shape_cast %24 : vector<4x1xf32> to vector<4x1xf32>
    %26 = vector.broadcast %25 : vector<4x1xf32> to vector<4x256xf32>
    %27 = vector.broadcast %cst_11 : f32 to vector<4x256xf32>
    %28 = arith.select %16, %26, %27 : vector<4x256xi1>, vector<4x256xf32>
    %cst_12 = arith.constant dense<0.000000e+00> : vector<256xf32>
    %29 = vector.multi_reduction <add>, %28, %cst_12 [0] : vector<4x256xf32> to vector<256xf32>
    %30 = vector.shape_cast %29 : vector<256xf32> to vector<1x256xf32>
    %31 = arith.mulf %23, %30 : vector<1x256xf32>
    %cst_13 = arith.constant 0.000000e+00 : f32
    %32 = vector.broadcast %cst_13 : f32 to vector<4x256xf32>
    %33 = arith.select %16, %11, %32 : vector<4x256xi1>, vector<4x256xf32>
    %cst_14 = arith.constant dense<0.000000e+00> : vector<256xf32>
    %34 = vector.multi_reduction <add>, %33, %cst_14 [0] : vector<4x256xf32> to vector<256xf32>
    %35 = vector.shape_cast %34 : vector<256xf32> to vector<1x256xf32>
    %36 = arith.divf %35, %13 : vector<1x256xf32>
    %cst_15 = arith.constant 1.000000e+00 : f32
    %37 = vector.broadcast %cst_15 : f32 to vector<1x256xf32>
    %38 = arith.subf %37, %36 : vector<1x256xf32>
    %cst_16 = arith.constant 0.000000e+00 : f32
    %39 = vector.broadcast %cst_16 : f32 to vector<1x256xf32>
    %40 = arith.maximumf %38, %39 : vector<1x256xf32>
    %41 = arith.mulf %40, %40 : vector<1x256xf32>
    %42 = arith.mulf %41, %31 : vector<1x256xf32>
    %cst_17 = arith.constant 0.000000e+00 : f32
    %43 = vector.broadcast %cst_17 : f32 to vector<1x256xf32>
    %44 = arith.subf %43, %42 : vector<1x256xf32>
    %c0_18 = arith.constant 0 : index
    %c0_19 = arith.constant 0 : index
    %45 = vector.load %arg7[%c0_18, %c0_19] : memref<1x256xf32, #tpu.memory_space<vmem>>, vector<1x256xf32>
    %46 = arith.addf %45, %44 : vector<1x256xf32>
    %c0_20 = arith.constant 0 : index
    %c0_21 = arith.constant 0 : index
    %47 = vector.load %arg7[%c0_20, %c0_21] : memref<1x256xf32, #tpu.memory_space<vmem>>, vector<1x256xf32>
    tpu.vector_store %arg7[%c0_20, %c0_21], %46 {strides = array<i32>} : memref<1x256xf32, #tpu.memory_space<vmem>>, vector<1x256xf32>,
    %c0_i32_22 = arith.constant 0 : i32
    %48 = arith.cmpi eq, %arg2, %c0_i32_22 : i32
    %49 = arith.extui %48 : i1 to i32
    %c0_i32_23 = arith.constant 0 : i32
    %50 = arith.cmpi ne, %49, %c0_i32_23 : i32
    scf.if %50 {
      %c0_24 = arith.constant 0 : index
      %c0_25 = arith.constant 0 : index
      %51 = vector.load %arg7[%c0_24, %c0_25] : memref<1x256xf32, #tpu.memory_space<vmem>>, vector<1x256xf32>
      %cst_26 = arith.constant dense<0.000000e+00> : vector<1xf32>
      %52 = vector.multi_reduction <add>, %51, %cst_26 [1] : vector<1x256xf32> to vector<1xf32>
      %53 = vector.shape_cast %52 : vector<1xf32> to vector<1x1xf32>
      %54 = vector.shape_cast %53 : vector<1x1xf32> to vector<1x1x1xf32>
      %c0_27 = arith.constant 0 : index
      %c0_28 = arith.constant 0 : index
      %c0_29 = arith.constant 0 : index
      %55 = vector.load %arg6[%c0_27, %c0_28, %c0_29] : memref<1x1x1xf32, #tpu.memory_space<vmem>>, vector<1x1x1xf32>
      tpu.vector_store %arg6[%c0_27, %c0_28, %c0_29], %54 {strides = array<i32>} : memref<1x1x1xf32, #tpu.memory_space<vmem>>, vector<1x1x1xf32>,
    } else {
    }
    return
  }
  func.func @transform_0(%arg0: i32, %arg1: i32, %arg2: i32) -> (i32, i32, i32) {
    %c1_i32 = arith.constant 1 : i32
    %0 = arith.muli %arg1, %c1_i32 : i32
    %1 = arith.addi %0, %arg2 : i32
    %c0_i32 = arith.constant 0 : i32
    %2 = arith.minsi %1, %c0_i32 : i32
    %c0_i32_0 = arith.constant 0 : i32
    %c0_i32_1 = arith.constant 0 : i32
    return %arg0, %c0_i32_0, %2 : i32, i32, i32
  }
  func.func @transform_1(%arg0: i32, %arg1: i32, %arg2: i32) -> (i32, i32, i32) {
    %c1_i32 = arith.constant 1 : i32
    %0 = arith.muli %arg1, %c1_i32 : i32
    %1 = arith.addi %0, %arg2 : i32
    %c0_i32 = arith.constant 0 : i32
    %2 = arith.minsi %1, %c0_i32 : i32
    %c0_i32_0 = arith.constant 0 : i32
    %c0_i32_1 = arith.constant 0 : i32
    return %arg0, %c0_i32_0, %2 : i32, i32, i32
  }
  func.func @transform_2(%arg0: i32, %arg1: i32, %arg2: i32) -> (i32, i32) {
    %c0_i32 = arith.constant 0 : i32
    %c0_i32_0 = arith.constant 0 : i32
    %c0_i32_1 = arith.constant 0 : i32
    return %c0_i32, %c0_i32_0 : i32, i32
  }
  func.func @transform_3(%arg0: i32, %arg1: i32, %arg2: i32) -> (i32, i32, i32) {
    %c1_i32 = arith.constant 1 : i32
    %0 = arith.muli %arg0, %c1_i32 : i32
    %1 = arith.addi %0, %arg1 : i32
    %c0_i32 = arith.constant 0 : i32
    %c0_i32_0 = arith.constant 0 : i32
    %c0_i32_1 = arith.constant 0 : i32
    return %1, %c0_i32, %c0_i32_0 : i32, i32, i32
  }
}

</mosaic_0001>

<llo_original>
// kernel: tpu_custom_call.1
$region0: #{tpu_custom_call.1}
  #allocation0 [shape = 'u32[]', space=smem, size = 0x4, offset = 0x4, fixed_abs, tag = 'smem constant byte address 0x4 - core index']
  #allocation1 [shape = 'u32[72,128]{1,0:T(1,128)}', space=vmem, size = 0x9000, scoped, tag = 'internal scratch']
  #allocation2 [shape = 'f32[1,256]{1,0:T(1,128)}', space=vmem, size = 0x400, scoped, tag = 'scratch operand']
  %s0 = inlined_call_operand.hbm [shape: f32[2,4,256], index: 0, kind: input, shape index: {}]
  %s1 = inlined_call_operand.vmem [shape: s32[2,1,256], index: 1, kind: input, shape index: {}]
  %s2 = inlined_call_operand.vmem [shape: f32[4,1], index: 2, kind: input, shape index: {}]
  %s3 = inlined_call_operand.vmem [shape: f32[2,1,1], index: 3, kind: output, shape index: {}]
  %s4 = sld [smem:[#allocation0]]
  $region57: #{tpu_custom_call.1} parent=0
    _
  %s6 = ssub.s32 1, %s4
  %s7 = scalar_select 0, %s6, %s4
  $region1: #{tpu_custom_call.1} parent=0
    #allocation3 [shape = 'u8[8192]{0}', space=vmem, size = 0x2000, scoped, tag = 'input window, operand 0']
    #allocation4 [shape = 's32[2]{0}', space=sflag, size = 0x8, scoped, tag = 'scoped memory for tpu_custom_call.1']
    %8 = vsyncpa [#allocation4], 0
    %s9 = scalar_lea.sflag [#allocation4], 1
    %10 = vsyncpa %s9, 0
    loop: start=0, step=1, limit=4
    $region2: #{tpu_custom_call.1} parent=1 // loop_pre_header
      _
    $region3: #{tpu_custom_call.1} parent=1 // loop_header
      %s12 = sphi 0, %s16
      %p13 = scmp.ge.s32.totalorder %s12, 4
      %s19 = sphi 0, %s38
      %s20 = sphi 0, %s34
      %s21 = sphi 0, %s30
      %s22 = sphi 0, %s19
      %s23 = sphi 0, %s20
      %s24 = sphi 0, %s21
      %s25 = sphi 0, %s22
      %s26 = sphi 0, %s23
      %s27 = sphi 0, %s24
      %s49 = sphi 0, %s51
      %s52 = sphi 0, %s49
      %s53 = sphi 0, %s52
      %s69 = sphi 0, %s53
      %s83 = sphi 0, %s85
      %s86 = sphi 0, %s83
      %s87 = sphi 0, %s86
      %s103 = sphi 0, %s87
      %s107 = sphi 0, %s107
      %s109 = sphi 0, %s107
      %s110 = sphi 0, %s109
      %s124 = sphi 0, %s110
      %s132 = sphi 0, %s134
      %s135 = sphi 0, %s132
      %s136 = sphi 0, %s135
      %s152 = sphi 0, %s136
    $region4: #{tpu_custom_call.1} parent=1 // loop_header_branch
      %15 = sbr.rel (%p13) target = $region8
    $region5: #{tpu_custom_call.1} parent=1 // loop_body
      %s17 = ssub.s32 %s12, 1
      %s18 = ssub.s32 %s12, 2
      %s28 = sadd.s32 1, %s21
      %p29 = scmp.ge.s32.totalorder %s28, 1
      %s30 = scalar_select %p29, 0, %s28
      %s31 = sadd.s32 1, %s20
      %s32 = scalar_select %p29, %s31, %s20
      %p33 = scmp.ge.s32.totalorder %s32, 1
      %s34 = scalar_select %p33, 0, %s32
      %s35 = sadd.s32 1, %s19
      %s36 = scalar_select %p33, %s35, %s19
      %p37 = scmp.ge.s32.totalorder %s36, 2
      %s38 = scalar_select %p37, 0, %s36
      %s39 = sadd.s32 %s20, %s21
      %p40 = scmp.lt.s32.totalorder %s39, 0
      %s41 = scalar_select %p40, %s39, 0
      %s42 = sadd.s32 %s34, %s30
      %p43 = scmp.lt.s32.totalorder %s42, 0
      %s44 = scalar_select %p43, %s42, 0
      %s45 = ssub.s32 %s19, %s38
      %s46 = ssub.s32 %s41, %s44
      %s47 = sor.u32 %s45, %s46
      %p48 = scmp.eq.s32.totalorder %s47, 0
      %s50 = sadd.s32 %s49, 1
      %s51 = scalar_select %p48, %s49, %s50
      %p54 = pneg %p48
      %p55 = scmp.eq.s32.totalorder %s12, 1
      %p56 = por %p54, %p55
      %p57 = scmp.ne.s32.totalorder %s49, %s52
      %p58 = scmp.eq.s32.totalorder %s12, 0
      %p59 = por %p57, %p58
      %p60 = scmp.ne.s32.totalorder %s49, %s52
      %p61 = scmp.eq.s32.totalorder %s17, 1
      %p62 = por %p60, %p61
      %p63 = scmp.ne.s32.totalorder %s52, %s53
      %p64 = scmp.eq.s32.totalorder %s17, 0
      %p65 = por %p63, %p64
      %p66 = scmp.ne.s32.totalorder %s52, %s53
      %p67 = scmp.eq.s32.totalorder %s18, 1
      %p68 = por %p66, %p67
      %p70 = scmp.ne.s32.totalorder %s53, %s69
      %p71 = scmp.eq.s32.totalorder %s18, 0
      %p72 = por %p70, %p71
      %s73 = sadd.s32 %s20, %s21
      %p74 = scmp.lt.s32.totalorder %s73, 0
      %s75 = scalar_select %p74, %s73, 0
      %s76 = sadd.s32 %s34, %s30
      %p77 = scmp.lt.s32.totalorder %s76, 0
      %s78 = scalar_select %p77, %s76, 0
      %s79 = ssub.s32 %s19, %s38
      %s80 = ssub.s32 %s75, %s78
      %s81 = sor.u32 %s79, %s80
      %p82 = scmp.eq.s32.totalorder %s81, 0
      %s84 = sadd.s32 %s83, 1
      %s85 = scalar_select %p82, %s83, %s84
      %p88 = pneg %p82
      %p89 = scmp.eq.s32.totalorder %s12, 1
      %p90 = por %p88, %p89
      %p91 = scmp.ne.s32.totalorder %s83, %s86
      %p92 = scmp.eq.s32.totalorder %s12, 0
      %p93 = por %p91, %p92
      %p94 = scmp.ne.s32.totalorder %s83, %s86
      %p95 = scmp.eq.s32.totalorder %s17, 1
      %p96 = por %p94, %p95
      %p97 = scmp.ne.s32.totalorder %s86, %s87
      %p98 = scmp.eq.s32.totalorder %s17, 0
      %p99 = por %p97, %p98
      %p100 = scmp.ne.s32.totalorder %s86, %s87
      %p101 = scmp.eq.s32.totalorder %s18, 1
      %p102 = por %p100, %p101
      %p104 = scmp.ne.s32.totalorder %s87, %s103
      %p105 = scmp.eq.s32.totalorder %s18, 0
      %p106 = por %p104, %p105
      %s108 = sadd.s32 %s107, 1
      %p111 = scmp.eq.s32.totalorder %s12, 1
      %p112 = scmp.ne.s32.totalorder %s107, %s109
      %p113 = scmp.eq.s32.totalorder %s12, 0
      %p114 = por %p112, %p113
      %p115 = scmp.ne.s32.totalorder %s107, %s109
      %p116 = scmp.eq.s32.totalorder %s17, 1
      %p117 = por %p115, %p116
      %p118 = scmp.ne.s32.totalorder %s109, %s110
      %p119 = scmp.eq.s32.totalorder %s17, 0
      %p120 = por %p118, %p119
      %p121 = scmp.ne.s32.totalorder %s109, %s110
      %p122 = scmp.eq.s32.totalorder %s18, 1
      %p123 = por %p121, %p122
      %p125 = scmp.ne.s32.totalorder %s110, %s124
      %p126 = scmp.eq.s32.totalorder %s18, 0
      %p127 = por %p125, %p126
      %s128 = sadd.s32 %s19, %s20
      %s129 = sadd.s32 %s38, %s34
      %s130 = ssub.s32 %s128, %s129
      %p131 = scmp.eq.s32.totalorder %s130, 0
      %s133 = sadd.s32 %s132, 1
      %s134 = scalar_select %p131, %s132, %s133
      %p137 = pneg %p131
      %p138 = scmp.eq.s32.totalorder %s12, 1
      %p139 = por %p137, %p138
      %p140 = scmp.ne.s32.totalorder %s132, %s135
      %p141 = scmp.eq.s32.totalorder %s12, 0
      %p142 = por %p140, %p141
      %p143 = scmp.ne.s32.totalorder %s132, %s135
      %p144 = scmp.eq.s32.totalorder %s17, 1
      %p145 = por %p143, %p144
      %p146 = scmp.ne.s32.totalorder %s135, %s136
      %p147 = scmp.eq.s32.totalorder %s17, 0
      %p148 = por %p146, %p147
      %p149 = scmp.ne.s32.totalorder %s135, %s136
      %p150 = scmp.eq.s32.totalorder %s18, 1
      %p151 = por %p149, %p150
      %p153 = scmp.ne.s32.totalorder %s136, %s152
      %p154 = scmp.eq.s32.totalorder %s18, 0
      %p155 = por %p153, %p154
      %p156 = scmp.le.s32.totalorder 1, %s12
      %p157 = scmp.lt.s32.totalorder %s12, 3
      %p158 = pnand %p156, %p157
      %p159 = pneg %p158
      // Predicated region
      $region9: #{tpu_custom_call.1} parent=5 // pred_check
        _
      $region10: #{tpu_custom_call.1} parent=5 // pred_check_branch
        %161 = sbr.rel (%p158) target = $region12
      $region11: #{tpu_custom_call.1} parent=5 // pred_region
        %s162 = ssub.s32 %s12, 1
        // Predicated region
        $region13: #{tpu_custom_call.1} parent=11 // pred_check
          %p163 = pneg %p120
        $region14: #{tpu_custom_call.1} parent=11 // pred_check_branch
          %165 = sbr.rel (%p163) target = $region16
        $region15: #{tpu_custom_call.1} parent=11 // pred_region
          _
        $region16: #{tpu_custom_call.1} parent=11 // pred_fallthru
          _
      $region12: #{tpu_custom_call.1} parent=5 // pred_fallthru
        _
      %p166 = scmp.lt.s32.totalorder %s12, 2
      // Predicated region
      $region17: #{tpu_custom_call.1} parent=5 // pred_check
        %p167 = pneg %p166
      $region18: #{tpu_custom_call.1} parent=5 // pred_check_branch
        %169 = sbr.rel (%p167) target = $region20
      $region19: #{tpu_custom_call.1} parent=5 // pred_region
        // Predicated region
        $region21: #{tpu_custom_call.1} parent=19 // pred_check
          %p170 = pneg %p59
        $region22: #{tpu_custom_call.1} parent=19 // pred_check_branch
          %172 = sbr.rel (%p170) target = $region24
        $region23: #{tpu_custom_call.1} parent=19 // pred_region
          %s173 = sand.u32 %s49, 1
          %s174 = scalar_lea.sflag [#allocation4], %s173
          %s175 = sand.u32 %s49, 1
          %s176 = smul.addr %s175, 8
          %s177 = scalar_lea.vmem [#allocation3], %s176
          %s178 = sadd.s32 %s20, %s21
          %p179 = scmp.lt.s32.totalorder %s178, 0
          %s180 = scalar_select %p179, %s178, 0
          %s181 = smul.u32 2, %s180
          %183 = vsyncadd %s174, 0
          %s184 = smul.addr %s19, 2
          %s185 = sadd.s32 %s181, %s184
          %s186 = smul.addr %s185, 4
          %s187 = scalar_lea.hbm %s0, %s186
          %s189 = sshll.u32 %s187, 4
          %s190 = int_to_ptr.hbm [resolvable:$true] %s189
          %s191 = sshll.u32 %s177, 4
          %s192 = int_to_ptr.vmem [resolvable:$true] %s191
          %194 = dma.hbm_to_vmem [thread:$0]  %s190, 128, %s192, %s174
        $region24: #{tpu_custom_call.1} parent=19 // pred_fallthru
          _
        // Predicated region
        $region25: #{tpu_custom_call.1} parent=19 // pred_check
          %p195 = pneg %p93
        $region26: #{tpu_custom_call.1} parent=19 // pred_check_branch
          %197 = sbr.rel (%p195) target = $region28
        $region27: #{tpu_custom_call.1} parent=19 // pred_region
          %s198 = sadd.s32 %s20, %s21
          %p199 = scmp.lt.s32.totalorder %s198, 0
          %s200 = scalar_select %p199, %s198, 0
          %s201 = smul.u32 2, %s200
          %p202 = scmp.lt.s32.totalorder %s19, 1
          %s203 = scalar_select %p202, %s19, 1
          %p204 = scmp.lt.s32.totalorder %s201, 1
          %s205 = scalar_select %p204, %s201, 1
          %s206 = smul.addr %s203, 2
          %s207 = sadd.s32 %s205, %s206
          %s208 = scalar_lea.vmem %s1, %s207
          %s209 = sadd.s32 %s20, %s21
          %p210 = scmp.lt.s32.totalorder %s209, 0
          %s211 = scalar_select %p210, %s209, 0
          %s212 = smul.u32 2, %s211
        $region28: #{tpu_custom_call.1} parent=19 // pred_fallthru
          _
      $region20: #{tpu_custom_call.1} parent=5 // pred_fallthru
        _
      %p213 = scmp.le.s32.totalorder 1, %s12
      %p214 = scmp.lt.s32.totalorder %s12, 3
      %p215 = pnand %p213, %p214
      %p216 = pneg %p215
      // Predicated region
      $region29: #{tpu_custom_call.1} parent=5 // pred_check
        _
      $region30: #{tpu_custom_call.1} parent=5 // pred_check_branch
        %218 = sbr.rel (%p215) target = $region32
      $region31: #{tpu_custom_call.1} parent=5 // pred_region
        %s219 = ssub.s32 %s12, 1
        %s220 = sand.u32 %s52, 1
        %s221 = scalar_lea.sflag [#allocation4], %s220
        %s222 = sand.u32 %s52, 1
        %s223 = smul.addr %s222, 8
        %s224 = scalar_lea.vmem [#allocation3], %s223
        // Predicated region
        $region33: #{tpu_custom_call.1} parent=31 // pred_check
          %p225 = pneg %p65
        $region34: #{tpu_custom_call.1} parent=31 // pred_check_branch
          %227 = sbr.rel (%p225) target = $region36
        $region35: #{tpu_custom_call.1} parent=31 // pred_region
          %229 = dma.done %s221, 128
        $region36: #{tpu_custom_call.1} parent=31 // pred_fallthru
          _
        %s230 = sand.u32 %s52, 1
        %s231 = scalar_lea.sflag [#allocation4], %s230
        %s232 = sand.u32 %s52, 1
        %s233 = smul.addr %s232, 8
        %s234 = scalar_lea.vmem [#allocation3], %s233
        %p235 = pneg %p65
        %p236 = pneg %p62
        %s237 = sadd.s32 %s23, %s24
        %p238 = scmp.lt.s32.totalorder %s237, 0
        %s239 = scalar_select %p238, %s237, 0
        %s240 = smul.u32 2, %s239
        %p241 = scmp.lt.s32.totalorder %s22, 1
        %s242 = scalar_select %p241, %s22, 1
        %p243 = scmp.lt.s32.totalorder %s240, 1
        %s244 = scalar_select %p243, %s240, 1
        %s245 = smul.addr %s242, 2
        %s246 = sadd.s32 %s244, %s245
        %s247 = scalar_lea.vmem %s1, %s246
        %p248 = pneg %p99
        %p249 = pneg %p96
        %p250 = pneg %p120
        %p251 = pneg %p117
        %p252 = pneg %p148
        %p253 = pneg %p145
        %s254 = sadd.s32 %s22, %s23
        %p255 = scmp.lt.s32.totalorder %s254, 1
        %s256 = scalar_select %p255, %s254, 1
        %s257 = scalar_lea.vmem %s3, %s256
        %s258 = sadd.s32 %s23, %s24
        %p259 = scmp.lt.s32.totalorder %s258, 0
        %s260 = scalar_select %p259, %s258, 0
        %s261 = smul.u32 2, %s260
        %s262 = sadd.s32 %s23, %s24
        %p263 = scmp.lt.s32.totalorder %s262, 0
        %s264 = scalar_select %p263, %s262, 0
        %s265 = smul.u32 2, %s264
        %p266 = scmp.lt.s32.totalorder %s22, 1
        %s267 = scalar_select %p266, %s22, 1
        %p268 = scmp.lt.s32.totalorder %s265, 1
        %s269 = scalar_select %p268, %s265, 1
        %s270 = smul.addr %s267, 2
        %s271 = sadd.s32 %s269, %s270
        %s272 = scalar_lea.vmem %s1, %s271
        %s273 = sadd.s32 %s23, %s24
        %p274 = scmp.lt.s32.totalorder %s273, 0
        %s275 = scalar_select %p274, %s273, 0
        %s276 = smul.u32 2, %s275
        %s277 = sadd.s32 %s22, %s23
        %p278 = scmp.lt.s32.totalorder %s277, 1
        %s279 = scalar_select %p278, %s277, 1
        %s280 = scalar_lea.vmem %s3, %s279
        %s281 = sadd.s32 %s22, %s23
        %p282 = scmp.eq.s32.totalorder %s24, 0
        // Predicated region
        $region37: #{tpu_custom_call.1} parent=31 // pred_check
          %p283 = pneg %p282
        $region38: #{tpu_custom_call.1} parent=31 // pred_check_branch
          %285 = sbr.rel (%p283) target = $region40
        $region39: #{tpu_custom_call.1} parent=31 // pred_region
          %v286 = vlaneseq
          %vm287 = vcmp.ge.s32.totalorder %v286, 0
          %vm288 = vcmp.lt.s32.totalorder %v286, 256
          %vm289 = vmand %vm287, %vm288
          %290 = vst.msk [vmem:[#allocation2] sm:$0x3] %vm289, 0.0
        $region40: #{tpu_custom_call.1} parent=31 // pred_fallthru
          _
        %v291 = vld [vmem:[%s224] sm:$0xff]
        %v292 = vld [vmem:[%s272] sm:$0x3]
        %294 = vst [vmem:[#allocation1] ss:$2 sm:$0xff] %v291
        %v295 = vld.sshfl [vmem:[#allocation1] sm:$0xff pattern:$0x75316420]
        %v296 = vld.sshfl [vmem:[#allocation1 + $0x8] sm:$0xff pattern:$0x75316420]
        %vm299 = vcmask 1043456
        %v300 = vsel %vm299, %v295, -inf
        %v301 = vrot.slane %v300, 4
        %v302 = vmax.f32 %v300, %v301
        %v303 = vrot.slane %v302, 2
        %v304 = vmax.f32 %v302, %v303
        %v305 = vrot.slane %v304, 1
        %v306 = vmax.f32 %v304, %v305
        %v307 = vsel %vm299, %v296, -inf
        %v308 = vrot.slane %v307, 4
        %v309 = vmax.f32 %v307, %v308
        %v310 = vrot.slane %v309, 2
        %v311 = vmax.f32 %v309, %v310
        %v312 = vrot.slane %v311, 1
        %v313 = vmax.f32 %v311, %v312
        %v316 = vrot.slane %v313, 4
        %v317 = vsel %vm299, %v306, %v316
        %v319 = vsub.f32 %v291, %v317
        %v320 = vmul.f32 %v319, 1.442695
        %v321 = vpow.pop %v320
        %323 = vst [vmem:[#allocation1] ss:$2 sm:$0xff] %v321
        %v324 = vld.sshfl [vmem:[#allocation1] sm:$0xff pattern:$0x75316420]
        %v325 = vld.sshfl [vmem:[#allocation1 + $0x8] sm:$0xff pattern:$0x75316420]
        %v328 = vsel %vm299, %v324, 0.0
        %v329 = vrot.slane %v328, 4
        %v330 = vadd.f32 %v328, %v329
        %v331 = vrot.slane %v330, 2
        %v332 = vadd.f32 %v330, %v331
        %v333 = vrot.slane %v332, 1
        %v334 = vadd.f32 %v332, %v333
        %v335 = vsel %vm299, %v325, 0.0
        %v336 = vrot.slane %v335, 4
        %v337 = vadd.f32 %v335, %v336
        %v338 = vrot.slane %v337, 2
        %v339 = vadd.f32 %v337, %v338
        %v340 = vrot.slane %v339, 1
        %v341 = vadd.f32 %v339, %v340
        %v342 = vlaneseq
        %v343 = vshrl.u32 %v342, 7
        %v344 = vperm.slane %v292, 0
        %v345 = vperm.slane %v292, 1
        %vm346 = vcmp.eq.s32.totalorder %v343, %v344
        %vm347 = vcmp.eq.s32.totalorder %v343, %v345
        %348 = vst [vmem:[#allocation1] ss:$2 sm:$0xff] %v291
        %v349 = vld.sshfl [vmem:[#allocation1] sm:$0xff pattern:$0x75316420]
        %v350 = vld.sshfl [vmem:[#allocation1 + $0x8] sm:$0xff pattern:$0x75316420]
        %v353 = vsel %vm346, %v349, 0.0
        %v354 = vsel %vm347, %v350, 0.0
        %v355 = vsel %vm299, %v353, 0.0
        %v356 = vrot.slane %v355, 4
        %v357 = vadd.f32 %v355, %v356
        %v358 = vrot.slane %v357, 2
        %v359 = vadd.f32 %v357, %v358
        %v360 = vrot.slane %v359, 1
        %v361 = vadd.f32 %v359, %v360
        %v362 = vsel %vm299, %v354, 0.0
        %v363 = vrot.slane %v362, 4
        %v364 = vadd.f32 %v362, %v363
        %v365 = vrot.slane %v364, 2
        %v366 = vadd.f32 %v364, %v365
        %v367 = vrot.slane %v366, 1
        %v368 = vadd.f32 %v366, %v367
        %v369 = vsub.f32 %v361, %v306
        %v370 = vsub.f32 %v368, %v313
        %v371 = vlog2.pop %v334
        %v372 = vmul.f32 %v371, 0.6931472
        %v373 = vlog2.pop %v341
        %v374 = vmul.f32 %v373, 0.6931472
        %v375 = vsub.f32 %v369, %v372
        %v376 = vsub.f32 %v370, %v374
        %v377 = vld [vmem:[%s2] sm:$0xf]
        %379 = vset.pattern.permute.xlu0 0
        %380 = vperm.xlu0 %379, %v377
        %v381 = vpop.permute.xlu0 %380
        %v383 = vsel %vm346, %v381, 0.0
        %v384 = vsel %vm347, %v381, 0.0
        %v385 = vsel %vm299, %v383, 0.0
        %v386 = vrot.slane %v385, 4
        %v387 = vadd.f32 %v385, %v386
        %v388 = vrot.slane %v387, 2
        %v389 = vadd.f32 %v387, %v388
        %v390 = vrot.slane %v389, 1
        %v391 = vadd.f32 %v389, %v390
        %v392 = vsel %vm299, %v384, 0.0
        %v393 = vrot.slane %v392, 4
        %v394 = vadd.f32 %v392, %v393
        %v395 = vrot.slane %v394, 2
        %v396 = vadd.f32 %v394, %v395
        %v397 = vrot.slane %v396, 1
        %v398 = vadd.f32 %v396, %v397
        %v399 = vmul.f32 %v375, %v391
        %v400 = vmul.f32 %v376, %v398
        %401 = vst [vmem:[#allocation1] ss:$2 sm:$0xff] %v321
        %v402 = vld.sshfl [vmem:[#allocation1] sm:$0xff pattern:$0x75316420]
        %v403 = vld.sshfl [vmem:[#allocation1 + $0x8] sm:$0xff pattern:$0x75316420]
        %v406 = vsel %vm346, %v402, 0.0
        %v407 = vsel %vm347, %v403, 0.0
        %v408 = vsel %vm299, %v406, 0.0
        %v409 = vrot.slane %v408, 4
        %v410 = vadd.f32 %v408, %v409
        %v411 = vrot.slane %v410, 2
        %v412 = vadd.f32 %v410, %v411
        %v413 = vrot.slane %v412, 1
        %v414 = vadd.f32 %v412, %v413
        %v415 = vsel %vm299, %v407, 0.0
        %v416 = vrot.slane %v415, 4
        %v417 = vadd.f32 %v415, %v416
        %v418 = vrot.slane %v417, 2
        %v419 = vadd.f32 %v417, %v418
        %v420 = vrot.slane %v419, 1
        %v421 = vadd.f32 %v419, %v420
        %v422 = vrcp.pop %v334
        %v423 = vmul.f32 %v334, %v422
        %v424 = vsub.f32 1.0, %v423
        %v425 = vmul.f32 %v422, %v424
        %v426 = vadd.f32 %v422, %v425
        %vm427 = vweird.f32 %v334
        %vm428 = vweird.f32 %v422
        %vm429 = vmor %vm427, %vm428
        %v430 = vsel %vm429, %v422, %v426
        %v431 = vand.u32 2147483647, %v334
        %vm432 = vcmp.eq.f32.partialorder %v431, 8.507059e+37
        %v433 = vand.u32 %v334, 2147483648
        %v434 = vor.u32 1.1754944e-38, %v433
        %v435 = vsel %vm432, %v434, %v430
        %v436 = vmul.f32 %v414, %v435
        %v437 = vrcp.pop %v341
        %v438 = vmul.f32 %v341, %v437
        %v439 = vsub.f32 1.0, %v438
        %v440 = vmul.f32 %v437, %v439
        %v441 = vadd.f32 %v437, %v440
        %vm442 = vweird.f32 %v341
        %vm443 = vweird.f32 %v437
        %vm444 = vmor %vm442, %vm443
        %v445 = vsel %vm444, %v437, %v441
        %v446 = vand.u32 2147483647, %v341
        %vm447 = vcmp.eq.f32.partialorder %v446, 8.507059e+37
        %v448 = vand.u32 %v341, 2147483648
        %v449 = vor.u32 1.1754944e-38, %v448
        %v450 = vsel %vm447, %v449, %v445
        %v451 = vmul.f32 %v421, %v450
        %v452 = vsub.f32 1.0, %v436
        %v453 = vsub.f32 1.0, %v451
        %v454 = vmax.f32 %v452, 0.0
        %v455 = vmax.f32 %v453, 0.0
        %v456 = vmul.f32 %v454, %v454
        %v457 = vmul.f32 %v455, %v455
        %v458 = vmul.f32 %v456, %v399
        %v459 = vmul.f32 %v457, %v400
        %v460 = vsub.f32 0.0, %v458
        %v461 = vsub.f32 0.0, %v459
        %v462 = vld [vmem:[#allocation2] sm:$0x3]
        %v465 = vrot.slane %v461, 7
        %vm466 = vcmask 1040384
        %v467 = vsel %vm466, %v460, %v465
        %v469 = vadd.f32 %v462, %v467
        %v470 = vlaneseq
        %vm471 = vcmp.ge.s32.totalorder %v470, 0
        %vm472 = vcmp.lt.s32.totalorder %v470, 256
        %vm473 = vmand %vm471, %vm472
        %474 = vst.msk [vmem:[#allocation2] sm:$0x3] %vm473, %v469
        // Predicated region
        $region41: #{tpu_custom_call.1} parent=31 // pred_check
          %p475 = pneg %p282
        $region42: #{tpu_custom_call.1} parent=31 // pred_check_branch
          %477 = sbr.rel (%p475) target = $region44
        $region43: #{tpu_custom_call.1} parent=31 // pred_region
          %v478 = vld [vmem:[#allocation2] sm:$0x3]
          %v480 = vperm.slane %v478, 0
          %v481 = vperm.slane %v478, 1
          %v484 = vsel %vm466, %v480, 0.0
          %v485 = vsel %vm466, %v481, 0.0
          %v486 = vadd.f32 %v484, %v485
          %487 = vadd.xlane.f32.xlu0 %v486
          %v488 = vpop.xlane.xlu0 %487
          %vm489 = vcmask 0
          %490 = vst.msk [vmem:[%s280] sm:$0x1] %vm489, %v488
        $region44: #{tpu_custom_call.1} parent=31 // pred_fallthru
          _
        %s491 = sadd.s32 %s22, %s23
        %p492 = scmp.lt.s32.totalorder %s491, 1
        %s493 = scalar_select %p492, %s491, 1
        %s494 = scalar_lea.vmem %s3, %s493
        // Predicated region
        $region45: #{tpu_custom_call.1} parent=31 // pred_check
          %p495 = pneg %p145
        $region46: #{tpu_custom_call.1} parent=31 // pred_check_branch
          %497 = sbr.rel (%p495) target = $region48
        $region47: #{tpu_custom_call.1} parent=31 // pred_region
          %s498 = sadd.s32 %s22, %s23
        $region48: #{tpu_custom_call.1} parent=31 // pred_fallthru
          _
      $region32: #{tpu_custom_call.1} parent=5 // pred_fallthru
        _
      %p499 = scmp.le.s32.totalorder 2, %s12
      // Predicated region
      $region49: #{tpu_custom_call.1} parent=5 // pred_check
        %p500 = pneg %p499
      $region50: #{tpu_custom_call.1} parent=5 // pred_check_branch
        %502 = sbr.rel (%p500) target = $region52
      $region51: #{tpu_custom_call.1} parent=5 // pred_region
        %s503 = ssub.s32 %s12, 2
        // Predicated region
        $region53: #{tpu_custom_call.1} parent=51 // pred_check
          %p504 = pneg %p151
        $region54: #{tpu_custom_call.1} parent=51 // pred_check_branch
          %506 = sbr.rel (%p504) target = $region56
        $region55: #{tpu_custom_call.1} parent=51 // pred_region
          %s507 = sadd.s32 %s25, %s26
          %p508 = scmp.lt.s32.totalorder %s507, 1
          %s509 = scalar_select %p508, %s507, 1
          %s510 = scalar_lea.vmem %s3, %s509
        $region56: #{tpu_custom_call.1} parent=51 // pred_fallthru
          _
      $region52: #{tpu_custom_call.1} parent=5 // pred_fallthru
        _
    $region6: #{tpu_custom_call.1} parent=1 // loop_footer
      %s16 = sadd.s32 1, %s12
    $region7: #{tpu_custom_call.1} parent=1 // loop_footer_branch
      %11 = sbr.rel target = $region3
    $region8: #{tpu_custom_call.1} parent=1 // loop_exit
      _
    %511 = vsyncpa [#allocation4], 1
    %s512 = scalar_lea.sflag [#allocation4], 1
    %513 = vsyncpa %s512, 1

</llo_original>
